<compile_context>
chip_gen: v7x
topology: tpu7x:2x2x1
jax: 0.10.0
libtpu: 0.0.40
codegen_flags: <defaults>
</compile_context>

<pallas_src>
import jax
import jax.numpy as jnp
from jax.experimental import pallas as pl
from jax.experimental.pallas import tpu as pltpu


def _stacked_lstm_kernel(x_ref, wih0_ref, wihr_ref, whh_ref, b_ref,
                         h0_ref, c0_ref, hc_ref):
    """One timestep of a stack of LSTM cells (eval mode).

    x_ref    : (Bp, Din)        f32   timestep input
    wih0_ref : (Din, 4H)        bf16  layer-0 W_ih^T, gate cols ordered [i|f|o|g]
    wihr_ref : (max(L-1,1),H,4H)bf16  layers 1..L-1 W_ih^T (dummy row if L == 1)
    whh_ref  : (L, H, 4H)       bf16  W_hh^T per layer, same gate order
    b_ref    : (L, 1, 4H)       f32   b_ih + b_hh per layer, same gate order
    h0/c0    : (L, Bp, H)       f32
    hc_ref   : (Bp, 2*L*H)      f32   [:, l*H:(l+1)*H]      = h1[l]
                                      [:, L*H + l*H : ...]   = c1[l]
    """
    L, B, H = h0_ref.shape
    LH = L * H

    def cell(inp_bf16, w_ih, w_hh, bias, h_prev, c_prev):
        # Two accumulating MXU dots; f32 accumulation.
        gates = jnp.dot(inp_bf16, w_ih, preferred_element_type=jnp.float32)
        gates = gates + jnp.dot(h_prev.astype(jnp.bfloat16), w_hh,
                                preferred_element_type=jnp.float32)
        gates = gates + bias                                   # (B, 4H) f32
        # Gate columns are pre-ordered [i | f | o | g]:
        ifo = jax.nn.sigmoid(gates[:, :3 * H])                 # one EUP pass over 3H
        g_g = jnp.tanh(gates[:, 3 * H:])                       # one EUP pass over H
        i_g = ifo[:, 0 * H:1 * H]
        f_g = ifo[:, 1 * H:2 * H]
        o_g = ifo[:, 2 * H:3 * H]
        c_new = f_g * c_prev + i_g * g_g                       # f32 cell math
        h_new = o_g * jnp.tanh(c_new)
        return h_new, c_new

    inp = x_ref[...].astype(jnp.bfloat16)                      # (B, Din)
    for l in range(L):                                         # static unroll (small L)
        w_ih = wih0_ref[...] if l == 0 else wihr_ref[l - 1]
        h_new, c_new = cell(inp, w_ih, whh_ref[l], b_ref[l], h0_ref[l], c0_ref[l])
        hc_ref[:, l * H:(l + 1) * H] = h_new                   # packed, lane-dense slab
        hc_ref[:, LH + l * H:LH + (l + 1) * H] = c_new
        inp = h_new.astype(jnp.bfloat16)                       # inter-layer dropout == identity


def stacked_lstm_pallas(x, h0, c0, w_ih0_t, w_ih_rest_t, w_hh_t, b):
    """x: (B, Din); h0/c0: (L, B, H); weights packed via pack_stacked_lstm_params."""
    L, B, H = h0.shape
    Bp = max(8, ((B + 7) // 8) * 8)                            # full (8-row) sublanes
    if Bp != B:
        x = jnp.pad(x, ((0, Bp - B), (0, 0)))
        h0 = jnp.pad(h0, ((0, 0), (0, Bp - B), (0, 0)))
        c0 = jnp.pad(c0, ((0, 0), (0, Bp - B), (0, 0)))

    vmem = pl.BlockSpec(memory_space=pltpu.MemorySpace.VMEM)
    hc = pl.pallas_call(
        _stacked_lstm_kernel,
        out_shape=jax.ShapeDtypeStruct((Bp, 2 * L * H), jnp.float32),
        in_specs=[vmem] * 7,
        out_specs=vmem,
    )(x, w_ih0_t, w_ih_rest_t, w_hh_t, b, h0, c0)

    hc = hc[:B]                                                # drop padded batch rows
    h1 = hc[:, :L * H].reshape(B, L, H).transpose(1, 0, 2)     # (L, B, H)
    c1 = hc[:, L * H:].reshape(B, L, H).transpose(1, 0, 2)     # (L, B, H)
    return h1[-1], h1, c1                                      # (input, (h_1, c_1))


def pack_stacked_lstm_params(w_ih_list, w_hh_list, b_ih_list, b_hh_list,
                             hidden_size, weight_dtype=jnp.bfloat16):
    """Pack per-layer PyTorch-layout LSTMCell params into the kernel layout.

    PyTorch gate order (i, f, g, o) is permuted to (i, f, o, g); weights are
    transposed to (in, 4H) and cast to `weight_dtype` (bf16); biases stay f32.
    """
    H = hidden_size
    L = len(w_ih_list)

    def reorder_cols(w_t):   # (in, 4H) cols (i,f,g,o) -> (i,f,o,g)
        return jnp.concatenate(
            [w_t[:, 0 * H:2 * H], w_t[:, 3 * H:4 * H], w_t[:, 2 * H:3 * H]], axis=-1)

    def reorder_vec(v):      # (4H,) (i,f,g,o) -> (i,f,o,g)
        return jnp.concatenate([v[0 * H:2 * H], v[3 * H:4 * H], v[2 * H:3 * H]])

    w_ih0_t = reorder_cols(w_ih_list[0].T).astype(weight_dtype)              # (Din, 4H)
    w_hh_t = jnp.stack([reorder_cols(w.T) for w in w_hh_list]
                       ).astype(weight_dtype)                                # (L, H, 4H)
    if L > 1:
        w_ih_rest_t = jnp.stack([reorder_cols(w.T) for w in w_ih_list[1:]]
                                ).astype(weight_dtype)                       # (L-1, H, 4H)
    else:
        w_ih_rest_t = jnp.zeros((1, H, 4 * H), weight_dtype)                 # dummy, never read
    b = jnp.stack([reorder_vec(bi + bh).reshape(1, 4 * H)
                   for bi, bh in zip(b_ih_list, b_hh_list)]).astype(jnp.float32)
    return w_ih0_t, w_ih_rest_t, w_hh_t, b


def stacked_lstm_reference(x, h0, c0, w_ih_list, w_hh_list, b_ih_list, b_hh_list):
    """Pure-JAX f32 replica of the PyTorch StackedLSTM.forward (eval mode)."""
    L = h0.shape[0]
    H = h0.shape[-1]
    inp = x
    h1s, c1s = [], []
    for i in range(L):
        gates = inp @ w_ih_list[i].T + b_ih_list[i] + h0[i] @ w_hh_list[i].T + b_hh_list[i]
        ig = jax.nn.sigmoid(gates[:, 0 * H:1 * H])
        fg = jax.nn.sigmoid(gates[:, 1 * H:2 * H])
        gg = jnp.tanh(gates[:, 2 * H:3 * H])
        og = jax.nn.sigmoid(gates[:, 3 * H:4 * H])
        c1 = fg * c0[i] + ig * gg
        h1 = og * jnp.tanh(c1)
        inp = h1                                   # dropout == identity in eval mode
        h1s.append(h1)
        c1s.append(c1)
    return inp, jnp.stack(h1s), jnp.stack(c1s)


if __name__ == "__main__":
    num_layers = 2
    input_size = 48
    hidden_size = 32
    batch = 4
    H = hidden_size

    key = jax.random.PRNGKey(0)
    keys = jax.random.split(key, 3 + 4 * num_layers)

    x = jax.random.normal(keys[0], (batch, input_size), dtype=jnp.float32)
    h0 = jax.random.normal(keys[1], (num_layers, batch, hidden_size), dtype=jnp.float32)
    c0 = jax.random.normal(keys[2], (num_layers, batch, hidden_size), dtype=jnp.float32)

    # Deterministic parameter init, PyTorch-style uniform(-1/sqrt(H), 1/sqrt(H)).
    bound = 1.0 / (hidden_size ** 0.5)
    w_ih_list, w_hh_list, b_ih_list, b_hh_list = [], [], [], []
    for layer in range(num_layers):
        in_sz = input_size if layer == 0 else hidden_size
        k0, k1, k2, k3 = keys[3 + 4 * layer: 3 + 4 * layer + 4]
        w_ih_list.append(jax.random.uniform(k0, (4 * H, in_sz), jnp.float32, -bound, bound))
        w_hh_list.append(jax.random.uniform(k1, (4 * H, H), jnp.float32, -bound, bound))
        b_ih_list.append(jax.random.uniform(k2, (4 * H,), jnp.float32, -bound, bound))
        b_hh_list.append(jax.random.uniform(k3, (4 * H,), jnp.float32, -bound, bound))

    w_ih0_t, w_ih_rest_t, w_hh_t, b_stack = pack_stacked_lstm_params(
        w_ih_list, w_hh_list, b_ih_list, b_hh_list, hidden_size)

    out, h1, c1 = jax.block_until_ready(
        stacked_lstm_pallas(x, h0, c0, w_ih0_t, w_ih_rest_t, w_hh_t, b_stack))

    out_ref, h1_ref, c1_ref = stacked_lstm_reference(
        x, h0, c0, w_ih_list, w_hh_list, b_ih_list, b_hh_list)

    # bf16 matmul operands (f32 accumulation / cell state) -> relaxed tolerances.
    assert jnp.allclose(out, out_ref, atol=3e-2, rtol=3e-2)
    assert jnp.allclose(h1, h1_ref, atol=3e-2, rtol=3e-2)
    assert jnp.allclose(c1, c1_ref, atol=3e-2, rtol=3e-2)

    print("KERNEL_OK")
</pallas_src>

<mosaic_0001>
module attributes {stable_mosaic.version = 11 : i64} {
  func.func @_stacked_lstm_kernel(%arg0: memref<8x48xf32, #tpu.memory_space<vmem>>, %arg1: memref<48x128xbf16, #tpu.memory_space<vmem>>, %arg2: memref<1x32x128xbf16, #tpu.memory_space<vmem>>, %arg3: memref<2x32x128xbf16, #tpu.memory_space<vmem>>, %arg4: memref<2x1x128xf32, #tpu.memory_space<vmem>>, %arg5: memref<2x8x32xf32, #tpu.memory_space<vmem>>, %arg6: memref<2x8x32xf32, #tpu.memory_space<vmem>>, %arg7: memref<8x128xf32, #tpu.memory_space<vmem>>) attributes {dimension_semantics = [], scalar_prefetch = 0 : i64, scratch_operands = 0 : i64, tpu.core_type = #tpu.core_type<tc>} {
    %c0 = arith.constant 0 : index
    %c0_0 = arith.constant 0 : index
    %0 = vector.load %arg0[%c0, %c0_0] : memref<8x48xf32, #tpu.memory_space<vmem>>, vector<8x48xf32>
    %1 = arith.truncf %0 : vector<8x48xf32> to vector<8x48xbf16>
    %c0_1 = arith.constant 0 : index
    %c0_2 = arith.constant 0 : index
    %2 = vector.load %arg1[%c0_1, %c0_2] : memref<48x128xbf16, #tpu.memory_space<vmem>>, vector<48x128xbf16>
    %c0_3 = arith.constant 0 : index
    %c0_4 = arith.constant 0 : index
    %c0_5 = arith.constant 0 : index
    %3 = vector.load %arg3[%c0_3, %c0_4, %c0_5] : memref<2x32x128xbf16, #tpu.memory_space<vmem>>, vector<1x32x128xbf16>
    %4 = vector.shape_cast %3 : vector<1x32x128xbf16> to vector<32x128xbf16>
    %c0_6 = arith.constant 0 : index
    %c0_7 = arith.constant 0 : index
    %c0_8 = arith.constant 0 : index
    %5 = vector.load %arg4[%c0_6, %c0_7, %c0_8] : memref<2x1x128xf32, #tpu.memory_space<vmem>>, vector<1x1x128xf32>
    %6 = vector.shape_cast %5 : vector<1x1x128xf32> to vector<1x128xf32>
    %c0_9 = arith.constant 0 : index
    %c0_10 = arith.constant 0 : index
    %c0_11 = arith.constant 0 : index
    %7 = vector.load %arg5[%c0_9, %c0_10, %c0_11] : memref<2x8x32xf32, #tpu.memory_space<vmem>>, vector<1x8x32xf32>
    %8 = vector.shape_cast %7 : vector<1x8x32xf32> to vector<8x32xf32>
    %c0_12 = arith.constant 0 : index
    %c0_13 = arith.constant 0 : index
    %c0_14 = arith.constant 0 : index
    %9 = vector.load %arg6[%c0_12, %c0_13, %c0_14] : memref<2x8x32xf32, #tpu.memory_space<vmem>>, vector<1x8x32xf32>
    %10 = vector.shape_cast %9 : vector<1x8x32xf32> to vector<8x32xf32>
    %cst = arith.constant dense<0.000000e+00> : vector<8x128xf32>
    %11 = tpu.matmul %1, %2, %cst {dimension_numbers = #tpu.dot_dimension_numbers<[1], [0], [0], [1], [0, 0, 1, 1], [], []>} : vector<8x48xbf16>, vector<48x128xbf16>, vector<8x128xf32> -> vector<8x128xf32>
    %12 = arith.truncf %8 : vector<8x32xf32> to vector<8x32xbf16>
    %cst_15 = arith.constant dense<0.000000e+00> : vector<8x128xf32>
    %13 = tpu.matmul %12, %4, %cst_15 {dimension_numbers = #tpu.dot_dimension_numbers<[1], [0], [0], [1], [0, 0, 1, 1], [], []>} : vector<8x32xbf16>, vector<32x128xbf16>, vector<8x128xf32> -> vector<8x128xf32>
    %14 = arith.addf %11, %13 : vector<8x128xf32>
    %15 = vector.broadcast %6 : vector<1x128xf32> to vector<8x128xf32>
    %16 = arith.addf %14, %15 : vector<8x128xf32>
    %17 = vector.extract_strided_slice %16 {offsets = [0, 0], sizes = [8, 96], strides = [1, 1]} : vector<8x128xf32> to vector<8x96xf32>
    %18 = arith.negf %17 : vector<8x96xf32>
    %19 = math.exp %18 : vector<8x96xf32>
    %cst_16 = arith.constant 1.000000e+00 : f32
    %20 = vector.broadcast %cst_16 : f32 to vector<8x96xf32>
    %21 = arith.addf %20, %19 : vector<8x96xf32>
    %22 = arith.divf %20, %21 : vector<8x96xf32>
    %23 = vector.extract_strided_slice %16 {offsets = [0, 96], sizes = [8, 32], strides = [1, 1]} : vector<8x128xf32> to vector<8x32xf32>
    %24 = math.tanh %23 : vector<8x32xf32>
    %25 = vector.extract_strided_slice %22 {offsets = [0, 0], sizes = [8, 32], strides = [1, 1]} : vector<8x96xf32> to vector<8x32xf32>
    %26 = vector.extract_strided_slice %22 {offsets = [0, 32], sizes = [8, 32], strides = [1, 1]} : vector<8x96xf32> to vector<8x32xf32>
    %27 = vector.extract_strided_slice %22 {offsets = [0, 64], sizes = [8, 32], strides = [1, 1]} : vector<8x96xf32> to vector<8x32xf32>
    %28 = arith.mulf %26, %10 : vector<8x32xf32>
    %29 = arith.mulf %25, %24 : vector<8x32xf32>
    %30 = arith.addf %28, %29 : vector<8x32xf32>
    %31 = math.tanh %30 : vector<8x32xf32>
    %32 = arith.mulf %27, %31 : vector<8x32xf32>
    %c0_17 = arith.constant 0 : index
    %c0_18 = arith.constant 0 : index
    %33 = vector.load %arg7[%c0_17, %c0_18] : memref<8x128xf32, #tpu.memory_space<vmem>>, vector<8x32xf32>
    tpu.vector_store %arg7[%c0_17, %c0_18], %32 {strides = array<i32>} : memref<8x128xf32, #tpu.memory_space<vmem>>, vector<8x32xf32>,
    %c0_19 = arith.constant 0 : index
    %c64 = arith.constant 64 : index
    %34 = vector.load %arg7[%c0_19, %c64] : memref<8x128xf32, #tpu.memory_space<vmem>>, vector<8x32xf32>
    tpu.vector_store %arg7[%c0_19, %c64], %30 {strides = array<i32>} : memref<8x128xf32, #tpu.memory_space<vmem>>, vector<8x32xf32>,
    %35 = arith.truncf %32 : vector<8x32xf32> to vector<8x32xbf16>
    %c0_20 = arith.constant 0 : index
    %c0_21 = arith.constant 0 : index
    %c0_22 = arith.constant 0 : index
    %36 = vector.load %arg2[%c0_20, %c0_21, %c0_22] : memref<1x32x128xbf16, #tpu.memory_space<vmem>>, vector<1x32x128xbf16>
    %37 = vector.shape_cast %36 : vector<1x32x128xbf16> to vector<32x128xbf16>
    %c1 = arith.constant 1 : index
    %c0_23 = arith.constant 0 : index
    %c0_24 = arith.constant 0 : index
    %38 = vector.load %arg3[%c1, %c0_23, %c0_24] : memref<2x32x128xbf16, #tpu.memory_space<vmem>>, vector<1x32x128xbf16>
    %39 = vector.shape_cast %38 : vector<1x32x128xbf16> to vector<32x128xbf16>
    %c1_25 = arith.constant 1 : index
    %c0_26 = arith.constant 0 : index
    %c0_27 = arith.constant 0 : index
    %40 = vector.load %arg4[%c1_25, %c0_26, %c0_27] : memref<2x1x128xf32, #tpu.memory_space<vmem>>, vector<1x1x128xf32>
    %41 = vector.shape_cast %40 : vector<1x1x128xf32> to vector<1x128xf32>
    %c1_28 = arith.constant 1 : index
    %c0_29 = arith.constant 0 : index
    %c0_30 = arith.constant 0 : index
    %42 = vector.load %arg5[%c1_28, %c0_29, %c0_30] : memref<2x8x32xf32, #tpu.memory_space<vmem>>, vector<1x8x32xf32>
    %43 = vector.shape_cast %42 : vector<1x8x32xf32> to vector<8x32xf32>
    %c1_31 = arith.constant 1 : index
    %c0_32 = arith.constant 0 : index
    %c0_33 = arith.constant 0 : index
    %44 = vector.load %arg6[%c1_31, %c0_32, %c0_33] : memref<2x8x32xf32, #tpu.memory_space<vmem>>, vector<1x8x32xf32>
    %45 = vector.shape_cast %44 : vector<1x8x32xf32> to vector<8x32xf32>
    %cst_34 = arith.constant dense<0.000000e+00> : vector<8x128xf32>
    %46 = tpu.matmul %35, %37, %cst_34 {dimension_numbers = #tpu.dot_dimension_numbers<[1], [0], [0], [1], [0, 0, 1, 1], [], []>} : vector<8x32xbf16>, vector<32x128xbf16>, vector<8x128xf32> -> vector<8x128xf32>
    %47 = arith.truncf %43 : vector<8x32xf32> to vector<8x32xbf16>
    %cst_35 = arith.constant dense<0.000000e+00> : vector<8x128xf32>
    %48 = tpu.matmul %47, %39, %cst_35 {dimension_numbers = #tpu.dot_dimension_numbers<[1], [0], [0], [1], [0, 0, 1, 1], [], []>} : vector<8x32xbf16>, vector<32x128xbf16>, vector<8x128xf32> -> vector<8x128xf32>
    %49 = arith.addf %46, %48 : vector<8x128xf32>
    %50 = vector.broadcast %41 : vector<1x128xf32> to vector<8x128xf32>
    %51 = arith.addf %49, %50 : vector<8x128xf32>
    %52 = vector.extract_strided_slice %51 {offsets = [0, 0], sizes = [8, 96], strides = [1, 1]} : vector<8x128xf32> to vector<8x96xf32>
    %53 = arith.negf %52 : vector<8x96xf32>
    %54 = math.exp %53 : vector<8x96xf32>
    %cst_36 = arith.constant 1.000000e+00 : f32
    %55 = vector.broadcast %cst_36 : f32 to vector<8x96xf32>
    %56 = arith.addf %55, %54 : vector<8x96xf32>
    %57 = arith.divf %55, %56 : vector<8x96xf32>
    %58 = vector.extract_strided_slice %51 {offsets = [0, 96], sizes = [8, 32], strides = [1, 1]} : vector<8x128xf32> to vector<8x32xf32>
    %59 = math.tanh %58 : vector<8x32xf32>
    %60 = vector.extract_strided_slice %57 {offsets = [0, 0], sizes = [8, 32], strides = [1, 1]} : vector<8x96xf32> to vector<8x32xf32>
    %61 = vector.extract_strided_slice %57 {offsets = [0, 32], sizes = [8, 32], strides = [1, 1]} : vector<8x96xf32> to vector<8x32xf32>
    %62 = vector.extract_strided_slice %57 {offsets = [0, 64], sizes = [8, 32], strides = [1, 1]} : vector<8x96xf32> to vector<8x32xf32>
    %63 = arith.mulf %61, %45 : vector<8x32xf32>
    %64 = arith.mulf %60, %59 : vector<8x32xf32>
    %65 = arith.addf %63, %64 : vector<8x32xf32>
    %66 = math.tanh %65 : vector<8x32xf32>
    %67 = arith.mulf %62, %66 : vector<8x32xf32>
    %c0_37 = arith.constant 0 : index
    %c32 = arith.constant 32 : index
    %68 = vector.load %arg7[%c0_37, %c32] : memref<8x128xf32, #tpu.memory_space<vmem>>, vector<8x32xf32>
    tpu.vector_store %arg7[%c0_37, %c32], %67 {strides = array<i32>} : memref<8x128xf32, #tpu.memory_space<vmem>>, vector<8x32xf32>,
    %c0_38 = arith.constant 0 : index
    %c96 = arith.constant 96 : index
    %69 = vector.load %arg7[%c0_38, %c96] : memref<8x128xf32, #tpu.memory_space<vmem>>, vector<8x32xf32>
    tpu.vector_store %arg7[%c0_38, %c96], %65 {strides = array<i32>} : memref<8x128xf32, #tpu.memory_space<vmem>>, vector<8x32xf32>,
    return
  }
}

</mosaic_0001>

<llo_original>
// kernel: tpu_custom_call.1
$region0: #{tpu_custom_call.1}
  #allocation0 [shape = 'u32[]', space=smem, size = 0x4, offset = 0x4, fixed_abs, tag = 'smem constant byte address 0x4 - core index']
  #allocation1 [shape = 'u32[144,128]{1,0:T(1,128)}', space=vmem, size = 0x12000, scoped, tag = 'internal scratch']
  %s0 = inlined_call_operand.hbm [shape: f32[8,48], index: 0, kind: input, shape index: {}]
  %s1 = inlined_call_operand.hbm [shape: bf16[48,128], index: 1, kind: input, shape index: {}]
  %s2 = inlined_call_operand.hbm [shape: bf16[1,32,128], index: 2, kind: input, shape index: {}]
  %s3 = inlined_call_operand.hbm [shape: bf16[2,32,128], index: 3, kind: input, shape index: {}]
  %s4 = inlined_call_operand.vmem [shape: f32[2,1,128], index: 4, kind: input, shape index: {}]
  %s5 = inlined_call_operand.vmem [shape: f32[2,8,32], index: 5, kind: input, shape index: {}]
  %s6 = inlined_call_operand.hbm [shape: f32[2,8,32], index: 6, kind: input, shape index: {}]
  %s7 = inlined_call_operand.hbm [shape: f32[8,128], index: 7, kind: output, shape index: {}]
  %s8 = sld [smem:[#allocation0]]
  $region58: #{tpu_custom_call.1} parent=0
    _
  %s10 = ssub.s32 1, %s8
  %s11 = scalar_select 0, %s10, %s8
  $region1: #{tpu_custom_call.1} parent=0
    #allocation2 [shape = 'u8[4096]{0}', space=vmem, size = 0x1000, scoped, tag = 'input window, operand 0, single buffered']
    #allocation3 [shape = 's32[1]{0}', space=sflag, size = 0x4, scoped, tag = 'scoped memory for tpu_custom_call.1']
    #allocation4 [shape = 's32[1]{0}', space=sflag, size = 0x4, scoped, tag = 'scoped memory for tpu_custom_call.1']
    #allocation5 [shape = 'u8[12288]{0}', space=vmem, size = 0x3000, scoped, tag = 'input window, operand 1, single buffered']
    #allocation6 [shape = 's32[1]{0}', space=sflag, size = 0x4, scoped, tag = 'scoped memory for tpu_custom_call.1']
    #allocation7 [shape = 'u8[8192]{0}', space=vmem, size = 0x2000, scoped, tag = 'input window, operand 2, single buffered']
    #allocation8 [shape = 'u8[16384]{0}', space=vmem, size = 0x4000, scoped, tag = 'input window, operand 3, single buffered']
    #allocation9 [shape = 's32[1]{0}', space=sflag, size = 0x4, scoped, tag = 'scoped memory for tpu_custom_call.1']
    #allocation10 [shape = 'u8[8192]{0}', space=vmem, size = 0x2000, scoped, tag = 'input window, operand 6, single buffered']
    #allocation11 [shape = 'u8[4096]{0}', space=vmem, size = 0x1000, scoped, tag = 'output window, operand 0, single buffered']
    %12 = vsyncpa [#allocation3], 0
    %13 = vsyncpa [#allocation6], 0
    %14 = vsyncpa [#allocation9], 0
    %15 = vsyncpa [#allocation4], 0
    // Predicated region
    $region2: #{tpu_custom_call.1} parent=1 // pred_check
      _
    $region3: #{tpu_custom_call.1} parent=1 // pred_check_branch
      %17 = sbr.rel (0) target = $region5
    $region4: #{tpu_custom_call.1} parent=1 // pred_region
      %s19 = ssub.s32 128, 128
      %20 = vsyncadd [#allocation3], %s19
      %s22 = sshll.u32 [#allocation2], 4
      %s23 = int_to_ptr.vmem [resolvable:$true] %s22
      %25 = dma.hbm_to_vmem [thread:$0]  %s0, 128, %s23, [#allocation3]
    $region5: #{tpu_custom_call.1} parent=1 // pred_fallthru
      _
    // Predicated region
    $region6: #{tpu_custom_call.1} parent=1 // pred_check
      _
    $region7: #{tpu_custom_call.1} parent=1 // pred_check_branch
      %27 = sbr.rel (0) target = $region9
    $region8: #{tpu_custom_call.1} parent=1 // pred_region
      %s29 = ssub.s32 384, 384
      %30 = vsyncadd [#allocation6], %s29
      %s31 = sshll.u32 [#allocation5], 4
      %s32 = int_to_ptr.vmem [resolvable:$true] %s31
      %37 = dma.hbm_to_vmem [thread:$0]  %s1, 384, %s32, [#allocation6], 64, 64, 4
    $region9: #{tpu_custom_call.1} parent=1 // pred_fallthru
      _
    // Predicated region
    $region10: #{tpu_custom_call.1} parent=1 // pred_check
      _
    $region11: #{tpu_custom_call.1} parent=1 // pred_check_branch
      %39 = sbr.rel (0) target = $region13
    $region12: #{tpu_custom_call.1} parent=1 // pred_region
      %s41 = ssub.s32 256, 256
      %42 = vsyncadd [#allocation6], %s41
      %s43 = sshll.u32 [#allocation7], 4
      %s44 = int_to_ptr.vmem [resolvable:$true] %s43
      %49 = dma.hbm_to_vmem [thread:$0]  %s2, 256, %s44, [#allocation6], 64, 64, 4
    $region13: #{tpu_custom_call.1} parent=1 // pred_fallthru
      _
    // Predicated region
    $region14: #{tpu_custom_call.1} parent=1 // pred_check
      _
    $region15: #{tpu_custom_call.1} parent=1 // pred_check_branch
      %51 = sbr.rel (0) target = $region17
    $region16: #{tpu_custom_call.1} parent=1 // pred_region
      %s53 = ssub.s32 512, 512
      %54 = vsyncadd [#allocation9], %s53
      %s55 = sshll.u32 [#allocation8], 4
      %s56 = int_to_ptr.vmem [resolvable:$true] %s55
      %61 = dma.hbm_to_vmem [thread:$0]  %s3, 512, %s56, [#allocation9], 64, 64, 4
    $region17: #{tpu_custom_call.1} parent=1 // pred_fallthru
      _
    // Predicated region
    $region18: #{tpu_custom_call.1} parent=1 // pred_check
      _
    $region19: #{tpu_custom_call.1} parent=1 // pred_check_branch
      %63 = sbr.rel (0) target = $region21
    $region20: #{tpu_custom_call.1} parent=1 // pred_region
      _
    $region21: #{tpu_custom_call.1} parent=1 // pred_fallthru
      _
    // Predicated region
    $region22: #{tpu_custom_call.1} parent=1 // pred_check
      _
    $region23: #{tpu_custom_call.1} parent=1 // pred_check_branch
      %65 = sbr.rel (0) target = $region25
    $region24: #{tpu_custom_call.1} parent=1 // pred_region
      _
    $region25: #{tpu_custom_call.1} parent=1 // pred_fallthru
      _
    // Predicated region
    $region26: #{tpu_custom_call.1} parent=1 // pred_check
      _
    $region27: #{tpu_custom_call.1} parent=1 // pred_check_branch
      %67 = sbr.rel (0) target = $region29
    $region28: #{tpu_custom_call.1} parent=1 // pred_region
      %s69 = ssub.s32 256, 256
      %70 = vsyncadd [#allocation9], %s69
      %s71 = sshll.u32 [#allocation10], 4
      %s72 = int_to_ptr.vmem [resolvable:$true] %s71
      %77 = dma.hbm_to_vmem [thread:$0]  %s6, 256, %s72, [#allocation9], 128, 128, 8
    $region29: #{tpu_custom_call.1} parent=1 // pred_fallthru
      _
    // Predicated region
    $region30: #{tpu_custom_call.1} parent=1 // pred_check
      _
    $region31: #{tpu_custom_call.1} parent=1 // pred_check_branch
      %79 = sbr.rel (0) target = $region33
    $region32: #{tpu_custom_call.1} parent=1 // pred_region
      %80 = dma.done [#allocation3], 128
    $region33: #{tpu_custom_call.1} parent=1 // pred_fallthru
      _
    // Predicated region
    $region34: #{tpu_custom_call.1} parent=1 // pred_check
      _
    $region35: #{tpu_custom_call.1} parent=1 // pred_check_branch
      %82 = sbr.rel (0) target = $region37
    $region36: #{tpu_custom_call.1} parent=1 // pred_region
      %83 = dma.done [#allocation6], 384
    $region37: #{tpu_custom_call.1} parent=1 // pred_fallthru
      _
    // Predicated region
    $region38: #{tpu_custom_call.1} parent=1 // pred_check
      _
    $region39: #{tpu_custom_call.1} parent=1 // pred_check_branch
      %85 = sbr.rel (0) target = $region41
    $region40: #{tpu_custom_call.1} parent=1 // pred_region
      %86 = dma.done [#allocation6], 256
    $region41: #{tpu_custom_call.1} parent=1 // pred_fallthru
      _
    // Predicated region
    $region42: #{tpu_custom_call.1} parent=1 // pred_check
      _
    $region43: #{tpu_custom_call.1} parent=1 // pred_check_branch
      %88 = sbr.rel (0) target = $region45
    $region44: #{tpu_custom_call.1} parent=1 // pred_region
      %89 = dma.done [#allocation9], 512
    $region45: #{tpu_custom_call.1} parent=1 // pred_fallthru
      _
    // Predicated region
    $region46: #{tpu_custom_call.1} parent=1 // pred_check
      _
    $region47: #{tpu_custom_call.1} parent=1 // pred_check_branch
      %91 = sbr.rel (0) target = $region49
    $region48: #{tpu_custom_call.1} parent=1 // pred_region
      %92 = dma.done [#allocation9], 256
    $region49: #{tpu_custom_call.1} parent=1 // pred_fallthru
      _
    %v94 = vld [vmem:[#allocation2] sm:$0xff]
    %v95 = vpack.c.bf16 %v94, %v94
    %v96 = vld [vmem:[#allocation5] sm:$0xf]
    %v97 = vld [vmem:[#allocation5 + $0x4] sm:$0xf]
    %v98 = vld [vmem:[#allocation5 + $0x8] sm:$0xf]
    %v99 = vld [vmem:[#allocation5 + $0xc] sm:$0xf]
    %v100 = vld [vmem:[#allocation5 + $0x10] sm:$0xf]
    %v101 = vld [vmem:[#allocation5 + $0x14] sm:$0xf]
    %v102 = vld [vmem:[#allocation8] sm:$0xf]
    %v103 = vld [vmem:[#allocation8 + $0x4] sm:$0xf]
    %v104 = vld [vmem:[#allocation8 + $0x8] sm:$0xf]
    %v105 = vld [vmem:[#allocation8 + $0xc] sm:$0xf]
    %v106 = vld [vmem:[%s4] sm:$0x1]
    %v107 = vld [vmem:[%s5] sm:$0xff]
    %v108 = vld [vmem:[#allocation10] sm:$0xff]
    %v109 = vpack.c.bf16 %v107, %v107
    %v114 = vunpack.c.l.b16 %v102
    %v115 = vunpack.c.l.b16 %v103
    %v116 = vunpack.c.l.b16 %v104
    %v117 = vunpack.c.l.b16 %v105
    %v118 = vpack.c.b16 %v115, %v114
    %v119 = vpack.c.b16 %v117, %v116
    %vm122 = vcmask 261120
    %v124 = vsel %vm122, %v109, 0
    %126 = vmatprep.subr.bf16.mxu0 0
    %127 = vmatpush1.bf16.msra.mxu0 %v118
    %128 = vmatprep.subr.bf16.mxu0 0
    %129 = vmatpush1.bf16.msra.mxu0 %v119
    %130 = vmatprep.subr.bf16.mxu0 0
    %131 = vmatpush1.bf16.msra.mxu0 0
    %132 = vmatprep.subr.bf16.mxu0 0
    %133 = vmatpush1.bf16.msra.mxu0 0
    %134 = vmatprep.subr.bf16.mxu0 0
    %135 = vmatpush1.bf16.msra.mxu0 0
    %136 = vmatprep.subr.bf16.mxu0 0
    %137 = vmatpush1.bf16.msra.mxu0 0
    %138 = vmatprep.subr.bf16.mxu0 0
    %139 = vmatpush1.bf16.msra.mxu0 0
    %140 = vmatprep.subr.bf16.mxu0 0
    %141 = vmatpush1.bf16.msra.mxu0 0
    %142 = vmatprep.subr.bf16.mxu0 0
    %143 = vmatpush1.bf16.msra.mxu0 0
    %144 = vmatprep.subr.bf16.mxu0 0
    %145 = vmatpush1.bf16.msra.mxu0 0
    %146 = vmatprep.subr.bf16.mxu0 0
    %147 = vmatpush1.bf16.msra.mxu0 0
    %148 = vmatprep.subr.bf16.mxu0 0
    %149 = vmatpush1.bf16.msra.mxu0 0
    %150 = vmatprep.subr.bf16.mxu0 0
    %151 = vmatpush1.bf16.msra.mxu0 0
    %152 = vmatprep.subr.bf16.mxu0 0
    %153 = vmatpush1.bf16.msra.mxu0 0
    %154 = vmatprep.subr.bf16.mxu0 0
    %155 = vmatpush1.bf16.msra.mxu0 0
    %156 = vmatprep.subr.bf16.mxu0 0
    %157 = vmatpush1.bf16.msra.mxu0 0
    %158 = vmatprep.mubr.bf16.mxu0 0
    %159 = vmatmul.mubr.bf16.gmra.mrb[0].mxu0 %v124
    %v160 = vpop.f32.mrb[0].mxu0
    %v161 = vadd.f32 0.0, %v160
    %v162 = vpop.f32.mrb[0].mxu0
    %v163 = vpop.f32.mrb[0].mxu0
    %v164 = vpop.f32.mrb[0].mxu0
    %165 = vdwg.mxu0
    %v172 = vunpack.c.l.b16 %v96
    %v173 = vunpack.c.l.b16 %v97
    %v174 = vunpack.c.l.b16 %v98
    %v175 = vunpack.c.l.b16 %v99
    %v176 = vunpack.c.l.b16 %v100
    %v177 = vunpack.c.l.b16 %v101
    %v178 = vpack.c.b16 %v173, %v172
    %v179 = vpack.c.b16 %v175, %v174
    %v180 = vpack.c.b16 %v177, %v176
    %vm184 = vcmask 392192
    %v186 = vsel %vm184, %v95, 0
    %188 = vmatprep.subr.bf16.mxu0 0
    %189 = vmatpush1.bf16.msra.mxu0 %v178
    %190 = vmatprep.subr.bf16.mxu0 0
    %191 = vmatpush1.bf16.msra.mxu0 %v179
    %192 = vmatprep.subr.bf16.mxu0 0
    %193 = vmatpush1.bf16.msra.mxu0 %v180
    %194 = vmatprep.subr.bf16.mxu0 0
    %195 = vmatpush1.bf16.msra.mxu0 0
    %196 = vmatprep.subr.bf16.mxu0 0
    %197 = vmatpush1.bf16.msra.mxu0 0
    %198 = vmatprep.subr.bf16.mxu0 0
    %199 = vmatpush1.bf16.msra.mxu0 0
    %200 = vmatprep.subr.bf16.mxu0 0
    %201 = vmatpush1.bf16.msra.mxu0 0
    %202 = vmatprep.subr.bf16.mxu0 0
    %203 = vmatpush1.bf16.msra.mxu0 0
    %204 = vmatprep.subr.bf16.mxu0 0
    %205 = vmatpush1.bf16.msra.mxu0 0
    %206 = vmatprep.subr.bf16.mxu0 0
    %207 = vmatpush1.bf16.msra.mxu0 0
    %208 = vmatprep.subr.bf16.mxu0 0
    %209 = vmatpush1.bf16.msra.mxu0 0
    %210 = vmatprep.subr.bf16.mxu0 0
    %211 = vmatpush1.bf16.msra.mxu0 0
    %212 = vmatprep.subr.bf16.mxu0 0
    %213 = vmatpush1.bf16.msra.mxu0 0
    %214 = vmatprep.subr.bf16.mxu0 0
    %215 = vmatpush1.bf16.msra.mxu0 0
    %216 = vmatprep.subr.bf16.mxu0 0
    %217 = vmatpush1.bf16.msra.mxu0 0
    %218 = vmatprep.subr.bf16.mxu0 0
    %219 = vmatpush1.bf16.msra.mxu0 0
    %220 = vmatprep.mubr.bf16.mxu0 0
    %221 = vmatmul.mubr.bf16.gmra.mrb[0].mxu0 %v186
    %v222 = vpop.f32.mrb[0].mxu0
    %v223 = vadd.f32 %v161, %v222
    %v224 = vpop.f32.mrb[0].mxu0
    %v225 = vpop.f32.mrb[0].mxu0
    %v226 = vpop.f32.mrb[0].mxu0
    %227 = vdwg.mxu0
    %v229 = vlaneseq
    %v230 = vshrl.u32 %v229, 7
    %v231 = vsub.s32 0, %v230
    %v232 = vrot.slane %v106, %v231
    %v234 = vadd.f32 %v223, %v232
    %v235 = vxor.u32 %v234, 2147483648
    %v236 = vmul.f32 %v235, 1.442695
    %v237 = vpow.pop %v236
    %v238 = vadd.f32 %v237, 1.0
    %v239 = vrcp.pop %v238
    %v240 = vmul.f32 1.0, %v239
    %v241 = vtanh.pop %v234
    %243 = vrot.lane.b32.xlu0 %v108, 32
    %v244 = vpop.permute.xlu0 %243
    %v246 = vmul.f32 %v240, %v244
    %248 = vrot.lane.b32.xlu0 %v241, 32
    %v249 = vpop.permute.xlu0 %248
    %v251 = vmul.f32 %v240, %v249
    %253 = vrot.lane.b32.xlu0 %v251, 32
    %v254 = vpop.permute.xlu0 %253
    %v256 = vadd.f32 %v246, %v254
    %v257 = vtanh.pop %v256
    %259 = vrot.lane.b32.xlu0 %v257, 32
    %v260 = vpop.permute.xlu0 %259
    %v262 = vmul.f32 %v240, %v260
    %264 = vrot.lane.b32.xlu0 %v262, 64
    %v265 = vpop.permute.xlu0 %264
    %267 = vst.msk [vmem:[#allocation11] sm:$0xff] %vm122, %v265
    %269 = vrot.lane.b32.xlu0 %v256, 32
    %v270 = vpop.permute.xlu0 %269
    %vm272 = vcmask 785920
    %273 = vst.msk [vmem:[#allocation11] sm:$0xff] %vm272, %v270
    %v274 = vpack.c.bf16 %v262, %v262
    %v275 = vld [vmem:[#allocation7] sm:$0xf]
    %v276 = vld [vmem:[#allocation7 + $0x4] sm:$0xf]
    %v277 = vld [vmem:[#allocation7 + $0x8] sm:$0xf]
    %v278 = vld [vmem:[#allocation7 + $0xc] sm:$0xf]
    %s279 = scalar_lea.vmem [#allocation8], 16
    %v280 = vld [vmem:[%s279] sm:$0xf]
    %v281 = vld [vmem:[%s279 + $0x4] sm:$0xf]
    %v282 = vld [vmem:[%s279 + $0x8] sm:$0xf]
    %v283 = vld [vmem:[%s279 + $0xc] sm:$0xf]
    %s284 = scalar_lea.vmem %s4, 1
    %v285 = vld [vmem:[%s284] sm:$0x1]
    %s286 = scalar_lea.vmem %s5, 8
    %v287 = vld [vmem:[%s286] sm:$0xff]
    %s288 = scalar_lea.vmem [#allocation10], 8
    %v289 = vld [vmem:[%s288] sm:$0xff]
    %v290 = vpack.c.bf16 %v287, %v287
    %v295 = vunpack.c.l.b16 %v280
    %v296 = vunpack.c.l.b16 %v281
    %v297 = vunpack.c.l.b16 %v282
    %v298 = vunpack.c.l.b16 %v283
    %v299 = vpack.c.b16 %v296, %v295
    %v300 = vpack.c.b16 %v298, %v297
    %v304 = vsel %vm122, %v290, 0
    %306 = vmatprep.subr.bf16.mxu0 0
    %307 = vmatpush1.bf16.msra.mxu0 %v299
    %308 = vmatprep.subr.bf16.mxu0 0
    %309 = vmatpush1.bf16.msra.mxu0 %v300
    %310 = vmatprep.subr.bf16.mxu0 0
    %311 = vmatpush1.bf16.msra.mxu0 0
    %312 = vmatprep.subr.bf16.mxu0 0
    %313 = vmatpush1.bf16.msra.mxu0 0
    %314 = vmatprep.subr.bf16.mxu0 0
    %315 = vmatpush1.bf16.msra.mxu0 0
    %316 = vmatprep.subr.bf16.mxu0 0
    %317 = vmatpush1.bf16.msra.mxu0 0
    %318 = vmatprep.subr.bf16.mxu0 0
    %319 = vmatpush1.bf16.msra.mxu0 0
    %320 = vmatprep.subr.bf16.mxu0 0
    %321 = vmatpush1.bf16.msra.mxu0 0
    %322 = vmatprep.subr.bf16.mxu0 0
    %323 = vmatpush1.bf16.msra.mxu0 0
    %324 = vmatprep.subr.bf16.mxu0 0
    %325 = vmatpush1.bf16.msra.mxu0 0
    %326 = vmatprep.subr.bf16.mxu0 0
    %327 = vmatpush1.bf16.msra.mxu0 0
    %328 = vmatprep.subr.bf16.mxu0 0
    %329 = vmatpush1.bf16.msra.mxu0 0
    %330 = vmatprep.subr.bf16.mxu0 0
    %331 = vmatpush1.bf16.msra.mxu0 0
    %332 = vmatprep.subr.bf16.mxu0 0
    %333 = vmatpush1.bf16.msra.mxu0 0
    %334 = vmatprep.subr.bf16.mxu0 0
    %335 = vmatpush1.bf16.msra.mxu0 0
    %336 = vmatprep.subr.bf16.mxu0 0
    %337 = vmatpush1.bf16.msra.mxu0 0
    %338 = vmatprep.mubr.bf16.mxu0 0
    %339 = vmatmul.mubr.bf16.gmra.mrb[0].mxu0 %v304
    %v340 = vpop.f32.mrb[0].mxu0
    %v341 = vadd.f32 0.0, %v340
    %v342 = vpop.f32.mrb[0].mxu0
    %v343 = vpop.f32.mrb[0].mxu0
    %v344 = vpop.f32.mrb[0].mxu0
    %345 = vdwg.mxu0
    %347 = vrot.lane.b32.xlu0 %v274, 64
    %v348 = vpop.permute.xlu0 %347
    %v353 = vunpack.c.l.b16 %v275
    %v354 = vunpack.c.l.b16 %v276
    %v355 = vunpack.c.l.b16 %v277
    %v356 = vunpack.c.l.b16 %v278
    %v357 = vpack.c.b16 %v354, %v353
    %v358 = vpack.c.b16 %v356, %v355
    %v362 = vsel %vm122, %v348, 0
    %364 = vmatprep.subr.bf16.mxu0 0
    %365 = vmatpush1.bf16.msra.mxu0 %v357
    %366 = vmatprep.subr.bf16.mxu0 0
    %367 = vmatpush1.bf16.msra.mxu0 %v358
    %368 = vmatprep.subr.bf16.mxu0 0
    %369 = vmatpush1.bf16.msra.mxu0 0
    %370 = vmatprep.subr.bf16.mxu0 0
    %371 = vmatpush1.bf16.msra.mxu0 0
    %372 = vmatprep.subr.bf16.mxu0 0
    %373 = vmatpush1.bf16.msra.mxu0 0
    %374 = vmatprep.subr.bf16.mxu0 0
    %375 = vmatpush1.bf16.msra.mxu0 0
    %376 = vmatprep.subr.bf16.mxu0 0
    %377 = vmatpush1.bf16.msra.mxu0 0
    %378 = vmatprep.subr.bf16.mxu0 0
    %379 = vmatpush1.bf16.msra.mxu0 0
    %380 = vmatprep.subr.bf16.mxu0 0
    %381 = vmatpush1.bf16.msra.mxu0 0
    %382 = vmatprep.subr.bf16.mxu0 0
    %383 = vmatpush1.bf16.msra.mxu0 0
    %384 = vmatprep.subr.bf16.mxu0 0
    %385 = vmatpush1.bf16.msra.mxu0 0
    %386 = vmatprep.subr.bf16.mxu0 0
    %387 = vmatpush1.bf16.msra.mxu0 0
    %388 = vmatprep.subr.bf16.mxu0 0
    %389 = vmatpush1.bf16.msra.mxu0 0
    %390 = vmatprep.subr.bf16.mxu0 0
    %391 = vmatpush1.bf16.msra.mxu0 0
    %392 = vmatprep.subr.bf16.mxu0 0
    %393 = vmatpush1.bf16.msra.mxu0 0
    %394 = vmatprep.subr.bf16.mxu0 0
    %395 = vmatpush1.bf16.msra.mxu0 0
    %396 = vmatprep.mubr.bf16.mxu0 0
    %397 = vmatmul.mubr.bf16.gmra.mrb[0].mxu0 %v362
    %v398 = vpop.f32.mrb[0].mxu0
    %v399 = vadd.f32 %v341, %v398
    %v400 = vpop.f32.mrb[0].mxu0
    %v401 = vpop.f32.mrb[0].mxu0
    %v402 = vpop.f32.mrb[0].mxu0
    %403 = vdwg.mxu0
    %v405 = vlaneseq
    %v406 = vshrl.u32 %v405, 7
    %v407 = vsub.s32 0, %v406
    %v408 = vrot.slane %v285, %v407
    %v410 = vadd.f32 %v399, %v408
    %v411 = vxor.u32 %v410, 2147483648
    %v412 = vmul.f32 %v411, 1.442695
    %v413 = vpow.pop %v412
    %v414 = vadd.f32 %v413, 1.0
    %v415 = vrcp.pop %v414
    %v416 = vmul.f32 1.0, %v415
    %v417 = vtanh.pop %v410
    %419 = vrot.lane.b32.xlu0 %v289, 32
    %v420 = vpop.permute.xlu0 %419
    %v422 = vmul.f32 %v416, %v420
    %424 = vrot.lane.b32.xlu0 %v417, 32
    %v425 = vpop.permute.xlu0 %424
    %v427 = vmul.f32 %v416, %v425
    %429 = vrot.lane.b32.xlu0 %v427, 32
    %v430 = vpop.permute.xlu0 %429
    %v432 = vadd.f32 %v422, %v430
    %v433 = vtanh.pop %v432
    %435 = vrot.lane.b32.xlu0 %v433, 32
    %v436 = vpop.permute.xlu0 %435
    %v438 = vmul.f32 %v416, %v436
    %440 = vrot.lane.b32.xlu0 %v438, 96
    %v441 = vpop.permute.xlu0 %440
    %vm443 = vcmask 523520
    %444 = vst.msk [vmem:[#allocation11] sm:$0xff] %vm443, %v441
    %446 = vrot.lane.b32.xlu0 %v432, 64
    %v447 = vpop.permute.xlu0 %446
    %vm449 = vcmask 1048320
    %450 = vst.msk [vmem:[#allocation11] sm:$0xff] %vm449, %v447
    // Predicated region
    $region50: #{tpu_custom_call.1} parent=1 // pred_check
      _
    $region51: #{tpu_custom_call.1} parent=1 // pred_check_branch
      %452 = sbr.rel (0) target = $region53
    $region52: #{tpu_custom_call.1} parent=1 // pred_region
      %s454 = ssub.s32 128, 128
      %455 = vsyncadd [#allocation4], %s454
      %s457 = sshll.u32 [#allocation11], 4
      %s458 = int_to_ptr.vmem [resolvable:$true] %s457
      %460 = dma.vmem_to_hbm [thread:$0]  %s458, 128, %s7, [#allocation4]
    $region53: #{tpu_custom_call.1} parent=1 // pred_fallthru
      _
    // Predicated region
    $region54: #{tpu_custom_call.1} parent=1 // pred_check
      _
    $region55: #{tpu_custom_call.1} parent=1 // pred_check_branch
      %462 = sbr.rel (0) target = $region57
    $region56: #{tpu_custom_call.1} parent=1 // pred_region
      %463 = dma.done [#allocation4], 128
    $region57: #{tpu_custom_call.1} parent=1 // pred_fallthru
      _
    %464 = vsyncpa [#allocation3], 1
    %465 = vsyncpa [#allocation6], 1
    %466 = vsyncpa [#allocation9], 1
    %467 = vsyncpa [#allocation4], 1

</llo_original>
